<compile_context>
chip_gen: v7x
topology: tpu7x:2x2x1
jax: 0.10.0
libtpu: 0.0.40
codegen_flags: <defaults>
</compile_context>

<pallas_src>
import functools

import jax
import jax.numpy as jnp
from jax import lax
from jax.experimental import pallas as pl
from jax.experimental.pallas import tpu as pltpu

EPS = 1e-5  # PyTorch F.layer_norm default eps

_MAX_TILE_ROWS = 1024   # >= 512 rows already sits at ~85-86% of the HBM roofline
_MIN_GRID_STEPS = 4     # >= 2 steps per TensorCore on v7x's "parallel" megacore axis

_TPU_VMEM_CAP = None


def _vmem_capacity_bytes():
    """Per-core VMEM capacity (generation-aware), cached; conservative fallback."""
    global _TPU_VMEM_CAP
    if _TPU_VMEM_CAP is None:
        try:
            _TPU_VMEM_CAP = int(pltpu.get_tpu_info().vmem_capacity_bytes)
        except Exception:
            # Query unavailable: assume the smallest generation (v7x, 64 MiB/TC).
            _TPU_VMEM_CAP = 64 * 1024 * 1024
    return _TPU_VMEM_CAP


def _sublane_pack(dtype):
    """Sublane packing factor: 8 for 4-byte, 16 for 2-byte, 32 for 1-byte dtypes."""
    return max(8, 32 // jnp.dtype(dtype).itemsize)


def _layernorm_kernel(x_ref, scale_ref, o_ref, *, d, k):
    """Normalize every length-`d` segment of each row.

    x_ref/o_ref: (tile_rows, k*d); scale_ref: (1, k*d) (scale tiled k times).
    k == 1 is plain per-row LayerNorm; k > 1 packs k logical rows into the
    lane axis and does segmented per-row reductions via one-hot matmuls
    (the MXU is idle in this memory-bound kernel, so they are free).
    """
    x = x_ref[...].astype(jnp.float32)
    g = scale_ref[...].astype(jnp.float32)
    inv_d = jnp.float32(1.0 / d)  # hoisted static reciprocal

    if k == 1:
        mean = jnp.sum(x, axis=-1, keepdims=True) * inv_d
        diff = x - mean
        # Two-pass variance on the VMEM-resident tile: avoids the catastrophic
        # cancellation of E[x^2] - mean^2 and hides under the DMA roofline.
        var = jnp.sum(diff * diff, axis=-1, keepdims=True) * inv_d
        inv = lax.rsqrt(var + EPS)                      # EUP rsqrt (free slot)
        o_ref[...] = (diff * inv * g).astype(o_ref.dtype)
    else:
        kd = k * d
        # One-hot segment matrices built from 2-D iotas (no vector int division).
        j = lax.broadcasted_iota(jnp.int32, (kd, k), 0)
        s = lax.broadcasted_iota(jnp.int32, (kd, k), 1)
        seg = ((j >= s * d) & (j < (s + 1) * d)).astype(jnp.float32)        # (kd, k)
        jt = lax.broadcasted_iota(jnp.int32, (k, kd), 1)
        st = lax.broadcasted_iota(jnp.int32, (k, kd), 0)
        seg_t = ((jt >= st * d) & (jt < (st + 1) * d)).astype(jnp.float32)  # (k, kd)

        mean_s = jnp.dot(x, seg, preferred_element_type=jnp.float32) * inv_d  # (T, k)
        mean = jnp.dot(mean_s, seg_t, preferred_element_type=jnp.float32)     # (T, kd)
        diff = x - mean
        var_s = jnp.dot(diff * diff, seg,
                        preferred_element_type=jnp.float32) * inv_d           # (T, k)
        inv_s = lax.rsqrt(var_s + EPS)
        inv = jnp.dot(inv_s, seg_t, preferred_element_type=jnp.float32)       # (T, kd)
        o_ref[...] = (diff * inv * g).astype(o_ref.dtype)


def _pick_tile_rows(n_rows, lane_width, in_bytes, out_bytes, sub, budget):
    """Largest sublane-aligned row tile within `budget`, split into >= _MIN_GRID_STEPS
    roughly balanced steps when there is enough work (keeps both v7x TCs busy)."""
    # Per-row working set: double-buffered input + double-buffered output +
    # ~3 live fp32 temporaries (x_f32, diff, broadcast stats / y_f32).
    per_row = lane_width * (2 * in_bytes + 2 * out_bytes + 3 * 4)
    if sub * per_row > budget:
        # TODO(synk): feature-chunked (two grid axes) fallback for huge hidden sizes.
        raise ValueError(
            f"layer_norm: feature width {lane_width} needs {sub * per_row} bytes even "
            f"for a minimal {sub}-row tile, exceeding the VMEM tile budget of "
            f"{budget} bytes; a feature-chunked variant is required.")
    tile = max(sub, min((budget // per_row // sub) * sub, _MAX_TILE_ROWS))
    if n_rows <= tile and n_rows < _MIN_GRID_STEPS * sub:
        # Tiny problem: one exact block (block dims == array dims; no OOB reads).
        return n_rows
    if pl.cdiv(n_rows, tile) < _MIN_GRID_STEPS:
        # Shrink toward ~n_rows/4 rounded down to the sublane packing so the
        # "parallel" grid axis hands each TensorCore comparable work.
        tile = max(sub, (pl.cdiv(n_rows, _MIN_GRID_STEPS) // sub) * sub)
    return tile


@functools.partial(jax.jit, static_argnames=("tile_rows",))
def layer_norm(x, scale, *, tile_rows=None):
    """F.layer_norm(x, (d,), scale, bias=None): normalize over the last axis."""
    d = x.shape[-1]
    assert scale.shape == (d,)
    orig_shape = x.shape
    x2 = x.reshape(-1, d)
    n_rows = x2.shape[0]

    # Lane packing for small d: fold k rows into the 128-lane axis so loads,
    # stores and the scale multiply are lane-dense.
    k = 128 // d if (d < 128 and 128 % d == 0) else 1
    # TODO(synk): d that is neither a multiple of 128 nor a divisor of 128 still
    # runs with partially masked lanes; a general segmented packing would fix it.
    pad_rows = (-n_rows) % k
    if pad_rows:
        x2 = jnp.concatenate([x2, jnp.zeros((pad_rows, d), x2.dtype)], axis=0)
    n_packed = (n_rows + pad_rows) // k
    lane_width = k * d
    xp = x2.reshape(n_packed, lane_width)
    scale_p = (jnp.tile(scale, (k,)) if k > 1 else scale).reshape(1, lane_width)

    cap = _vmem_capacity_bytes()
    vmem_limit = int(0.6 * cap)      # ~38 MiB on v7x, ~77 MiB on v5e/v6e
    tile_budget = int(0.35 * cap)    # ~22 MiB on v7x, ~45 MiB on v5e/v6e
    sub = _sublane_pack(x.dtype)
    itemsize = jnp.dtype(x.dtype).itemsize
    tile = tile_rows if tile_rows is not None else _pick_tile_rows(
        n_packed, lane_width, itemsize, itemsize, sub, tile_budget)

    grid = (pl.cdiv(n_packed, tile),)
    # Ragged last block (when tile does not divide n_packed) is handled by
    # Pallas: OOB reads only pollute discarded rows (LayerNorm is row-local),
    # OOB writes are masked — no wrapper pad/slice HBM passes in the common case.
    #
    # NOTE: the scale BlockSpec's index_map is constant, so Pallas already skips
    # its re-DMA every step; forcing a single buffer would only save one
    # (1, lane_width) VMEM buffer, so it is not worth an extra knob here.
    out = pl.pallas_call(
        functools.partial(_layernorm_kernel, d=d, k=k),
        out_shape=jax.ShapeDtypeStruct((n_packed, lane_width), x.dtype),
        grid_spec=pltpu.PrefetchScalarGridSpec(
            num_scalar_prefetch=0,
            grid=grid,
            in_specs=[
                pl.BlockSpec((tile, lane_width), lambda i: (i, 0)),
                pl.BlockSpec((1, lane_width), lambda i: (0, 0)),
            ],
            out_specs=pl.BlockSpec((tile, lane_width), lambda i: (i, 0)),
        ),
        compiler_params=pltpu.CompilerParams(
            dimension_semantics=("parallel",),
            vmem_limit_bytes=vmem_limit,
        ),
    )(xp, scale_p)

    out = out.reshape(n_packed * k, d)
    if pad_rows:
        out = out[:n_rows]
    return out.reshape(orig_shape)


if __name__ == "__main__":
    key = jax.random.PRNGKey(0)

    def _ref(xx, ss):
        mu = jnp.mean(xx, axis=-1, keepdims=True)
        va = jnp.mean((xx - mu) ** 2, axis=-1, keepdims=True)
        return (xx - mu) / jnp.sqrt(va + EPS) * ss

    # Small-d demo (batch=2, seq=8, hidden=32): exercises the lane-packed path
    # (k = 4 rows folded into the 128-lane axis).
    batch, seq, d = 2, 8, 32
    x = jax.random.normal(key, (batch, seq, d), dtype=jnp.float32)
    scale = jnp.ones((d,), dtype=jnp.float32)  # matches nn.Parameter(torch.ones(d))
    # TODO(synk): @log_forward / the `log` kwarg is a host-side logging side
    # effect with no Pallas equivalent; only the forward math is implemented.
    y = layer_norm(x, scale)
    jax.block_until_ready(y)
    assert jnp.allclose(y, _ref(x, scale), atol=1e-4, rtol=1e-4), "mismatch (d=32 packed)"

    # Non-packed path with a ragged row count (d multiple of 128, N not a
    # multiple of the tile): pins the masked-last-block assumption.
    d2 = 128
    x2 = jax.random.normal(jax.random.PRNGKey(1), (100, d2), dtype=jnp.float32)
    scale2 = jax.random.normal(jax.random.PRNGKey(2), (d2,), dtype=jnp.float32)
    y2 = layer_norm(x2, scale2)
    jax.block_until_ready(y2)
    assert jnp.allclose(y2, _ref(x2, scale2), atol=1e-4, rtol=1e-4), "mismatch (d=128 ragged)"

    print("KERNEL_OK")
</pallas_src>

<mosaic_0001>
module attributes {stable_mosaic.version = 11 : i64} {
  func.func @_layernorm_kernel(%arg0: i32, %arg1: memref<4x128xf32, #tpu.memory_space<vmem>>, %arg2: memref<1x128xf32, #tpu.memory_space<vmem>>, %arg3: memref<4x128xf32, #tpu.memory_space<vmem>>) attributes {dimension_semantics = [#tpu.dimension_semantics<parallel>], iteration_bounds = array<i64: 1>, scalar_prefetch = 0 : i64, scratch_operands = 0 : i64, tpu.core_type = #tpu.core_type<tc>, window_params = [{transform_indices = @transform_0, window_bounds = array<i64: 4, 128>}, {pipeline_mode = #tpu.pipeline_mode<synchronous>, transform_indices = @transform_1, window_bounds = array<i64: 1, 128>}, {transform_indices = @transform_2, window_bounds = array<i64: 4, 128>}]} {
    %c0 = arith.constant 0 : index
    %c0_0 = arith.constant 0 : index
    %0 = vector.load %arg1[%c0, %c0_0] : memref<4x128xf32, #tpu.memory_space<vmem>>, vector<4x128xf32>
    %c0_1 = arith.constant 0 : index
    %c0_2 = arith.constant 0 : index
    %1 = vector.load %arg2[%c0_1, %c0_2] : memref<1x128xf32, #tpu.memory_space<vmem>>, vector<1x128xf32>
    %2 = tpu.iota {dimensions = array<i32: 0>} : vector<128x4xi32>
    %3 = tpu.iota {dimensions = array<i32: 1>} : vector<128x4xi32>
    %c32_i32 = arith.constant 32 : i32
    %4 = vector.broadcast %c32_i32 : i32 to vector<128x4xi32>
    %5 = arith.muli %3, %4 : vector<128x4xi32>
    %6 = arith.cmpi sge, %2, %5 : vector<128x4xi32>
    %c1_i32 = arith.constant 1 : i32
    %7 = vector.broadcast %c1_i32 : i32 to vector<128x4xi32>
    %8 = arith.addi %3, %7 : vector<128x4xi32>
    %c32_i32_3 = arith.constant 32 : i32
    %9 = vector.broadcast %c32_i32_3 : i32 to vector<128x4xi32>
    %10 = arith.muli %8, %9 : vector<128x4xi32>
    %11 = arith.cmpi slt, %2, %10 : vector<128x4xi32>
    %12 = arith.andi %6, %11 : vector<128x4xi1>
    %13 = arith.extui %12 : vector<128x4xi1> to vector<128x4xi32>
    %14 = arith.sitofp %13 : vector<128x4xi32> to vector<128x4xf32>
    %15 = tpu.iota {dimensions = array<i32: 1>} : vector<4x128xi32>
    %16 = tpu.iota {dimensions = array<i32: 0>} : vector<4x128xi32>
    %c32_i32_4 = arith.constant 32 : i32
    %17 = vector.broadcast %c32_i32_4 : i32 to vector<4x128xi32>
    %18 = arith.muli %16, %17 : vector<4x128xi32>
    %19 = arith.cmpi sge, %15, %18 : vector<4x128xi32>
    %c1_i32_5 = arith.constant 1 : i32
    %20 = vector.broadcast %c1_i32_5 : i32 to vector<4x128xi32>
    %21 = arith.addi %16, %20 : vector<4x128xi32>
    %c32_i32_6 = arith.constant 32 : i32
    %22 = vector.broadcast %c32_i32_6 : i32 to vector<4x128xi32>
    %23 = arith.muli %21, %22 : vector<4x128xi32>
    %24 = arith.cmpi slt, %15, %23 : vector<4x128xi32>
    %25 = arith.andi %19, %24 : vector<4x128xi1>
    %26 = arith.extui %25 : vector<4x128xi1> to vector<4x128xi32>
    %27 = arith.sitofp %26 : vector<4x128xi32> to vector<4x128xf32>
    %cst = arith.constant dense<0.000000e+00> : vector<4x4xf32>
    %28 = tpu.matmul %0, %14, %cst {dimension_numbers = #tpu.dot_dimension_numbers<[1], [0], [0], [1], [0, 0, 1, 1], [], []>} : vector<4x128xf32>, vector<128x4xf32>, vector<4x4xf32> -> vector<4x4xf32>
    %cst_7 = arith.constant 3.125000e-02 : f32
    %29 = vector.broadcast %cst_7 : f32 to vector<4x4xf32>
    %30 = arith.mulf %28, %29 : vector<4x4xf32>
    %cst_8 = arith.constant dense<0.000000e+00> : vector<4x128xf32>
    %31 = tpu.matmul %30, %27, %cst_8 {dimension_numbers = #tpu.dot_dimension_numbers<[1], [0], [0], [1], [0, 0, 1, 1], [], []>} : vector<4x4xf32>, vector<4x128xf32>, vector<4x128xf32> -> vector<4x128xf32>
    %32 = arith.subf %0, %31 : vector<4x128xf32>
    %33 = arith.mulf %32, %32 : vector<4x128xf32>
    %cst_9 = arith.constant dense<0.000000e+00> : vector<4x4xf32>
    %34 = tpu.matmul %33, %14, %cst_9 {dimension_numbers = #tpu.dot_dimension_numbers<[1], [0], [0], [1], [0, 0, 1, 1], [], []>} : vector<4x128xf32>, vector<128x4xf32>, vector<4x4xf32> -> vector<4x4xf32>
    %cst_10 = arith.constant 3.125000e-02 : f32
    %35 = vector.broadcast %cst_10 : f32 to vector<4x4xf32>
    %36 = arith.mulf %34, %35 : vector<4x4xf32>
    %cst_11 = arith.constant 9.99999974E-6 : f32
    %37 = vector.broadcast %cst_11 : f32 to vector<4x4xf32>
    %38 = arith.addf %36, %37 : vector<4x4xf32>
    %39 = math.rsqrt %38 : vector<4x4xf32>
    %cst_12 = arith.constant dense<0.000000e+00> : vector<4x128xf32>
    %40 = tpu.matmul %39, %27, %cst_12 {dimension_numbers = #tpu.dot_dimension_numbers<[1], [0], [0], [1], [0, 0, 1, 1], [], []>} : vector<4x4xf32>, vector<4x128xf32>, vector<4x128xf32> -> vector<4x128xf32>
    %41 = arith.mulf %32, %40 : vector<4x128xf32>
    %42 = vector.broadcast %1 : vector<1x128xf32> to vector<4x128xf32>
    %43 = arith.mulf %41, %42 : vector<4x128xf32>
    %c0_13 = arith.constant 0 : index
    %c0_14 = arith.constant 0 : index
    %44 = vector.load %arg3[%c0_13, %c0_14] : memref<4x128xf32, #tpu.memory_space<vmem>>, vector<4x128xf32>
    tpu.vector_store %arg3[%c0_13, %c0_14], %43 {strides = array<i32>} : memref<4x128xf32, #tpu.memory_space<vmem>>, vector<4x128xf32>,
    return
  }
  func.func @transform_0(%arg0: i32) -> (i32, i32) {
    %c0_i32 = arith.constant 0 : i32
    %c0_i32_0 = arith.constant 0 : i32
    return %arg0, %c0_i32 : i32, i32
  }
  func.func @transform_1(%arg0: i32) -> (i32, i32) {
    %c0_i32 = arith.constant 0 : i32
    %c0_i32_0 = arith.constant 0 : i32
    %c0_i32_1 = arith.constant 0 : i32
    return %c0_i32, %c0_i32_0 : i32, i32
  }
  func.func @transform_2(%arg0: i32) -> (i32, i32) {
    %c0_i32 = arith.constant 0 : i32
    %c0_i32_0 = arith.constant 0 : i32
    return %arg0, %c0_i32 : i32, i32
  }
}

</mosaic_0001>

<llo_original>
// kernel: tile.8
$region0: #{tile.8}
  #allocation0 [shape = 's32[1]{0}', space=sflag, size = 0x4, scoped, tag = 'scoped memory for tile.8']
  %s0 = inlined_call_operand.vmem [shape: f32[32], index: 0, kind: input, shape index: {}]
  %s1 = inlined_call_operand.vmem [shape: f32[4,32], index: 1, kind: output, shape index: {}]
  // Predicated region
  $region2: #{tile.8} parent=0 // pred_check
    _
  $region3: #{tile.8} parent=0 // pred_check_branch
    %3 = sbr.rel (0) target = $region5
  $region4: #{tile.8} parent=0 // pred_region
    _
  $region5: #{tile.8} parent=0 // pred_fallthru
    _
  %v4 = vld [vmem:[%s0] ss:$0 sm:$0xff]
  %5 = vst [vmem:[%s1] sm:$0xf] %v4

// kernel: tile.9
$region0: #{tile.9}
  %s0 = inlined_call_operand.vmem [shape: f32[4,32], index: 0, kind: input, shape index: {}]
  %s1 = inlined_call_operand.vmem [shape: f32[1,128], index: 1, kind: output, shape index: {}]
  $region1: #{tile.9} parent=0
    #allocation0 [shape = 'u8[4096]{0}', space=vmem, size = 0x1000, scoped, tag = 'scoped mem for output reshape']
    #allocation1 [shape = 'u8[4096]{0}', space=vmem, size = 0x1000, scoped, tag = 'scoped mem for input reshape']
    %s3 = sshllo.u32 0, 4
    %v4 = vld [vmem:[%s0] sm:%s3]
    %5 = vst [vmem:[#allocation1] sm:%s3] %v4
    %v6 = vld [vmem:[#allocation1] sm:$0x1]
    %vm7 = vcmask 261120
    %8 = vst.msk [vmem:[#allocation0] sm:$0x1] %vm7, %v6
    %s9 = scalar_lea.vmem [#allocation1], 3
    %v10 = vld [vmem:[%s9] sm:$0x1]
    %11 = vrot.lane.b32.xlu0 %v10, 96
    %v12 = vpop.permute.xlu0 %11
    %vm13 = vcmask 1048320
    %14 = vst.msk [vmem:[#allocation0] sm:$0x1] %vm13, %v12
    %s15 = scalar_lea.vmem [#allocation1], 2
    %v16 = vld [vmem:[%s15] sm:$0x1]
    %17 = vrot.lane.b32.xlu0 %v16, 64
    %v18 = vpop.permute.xlu0 %17
    %vm19 = vcmask 785920
    %20 = vst.msk [vmem:[#allocation0] sm:$0x1] %vm19, %v18
    %s21 = scalar_lea.vmem [#allocation1], 1
    %v22 = vld [vmem:[%s21] sm:$0x1]
    %23 = vrot.lane.b32.xlu0 %v22, 32
    %v24 = vpop.permute.xlu0 %23
    %vm25 = vcmask 523520
    %26 = vst.msk [vmem:[#allocation0] sm:$0x1] %vm25, %v24
    %s28 = sshllo.u32 0, 1
    %v30 = vld [vmem:[#allocation0] sm:%s28]
    %s31 = sshllo.u32 0, 1
    %32 = vst [vmem:[%s1] sm:%s31] %v30

// kernel: layer_norm.1
$region0: #{layer_norm.1}
  #allocation0 [shape = 'u32[]', space=smem, size = 0x4, offset = 0x4, fixed_abs, tag = 'smem constant byte address 0x4 - core index']
  #allocation1 [shape = 'u32[144,128]{1,0:T(1,128)}', space=vmem, size = 0x12000, scoped, tag = 'internal scratch']
  %s0 = inlined_call_operand.vmem [shape: f32[4,128], index: 0, kind: input, shape index: {}]
  %s1 = inlined_call_operand.vmem [shape: f32[1,128], index: 1, kind: input, shape index: {}]
  %s2 = inlined_call_operand.vmem [shape: f32[4,128], index: 2, kind: output, shape index: {}]
  %s3 = sld [smem:[#allocation0]]
  $region18: #{layer_norm.1} parent=0
    _
  %s5 = ssub.s32 1, %s3
  %s6 = scalar_select 0, %s5, %s3
  // Predicated region
  $region2: #{layer_norm.1} parent=0 // pred_check
    _
  $region3: #{layer_norm.1} parent=0 // pred_check_branch
    %8 = sbr.rel (0) target = $region5
  $region4: #{layer_norm.1} parent=0 // pred_region
    _
  $region5: #{layer_norm.1} parent=0 // pred_fallthru
    _
  // Predicated region
  $region6: #{layer_norm.1} parent=0 // pred_check
    _
  $region7: #{layer_norm.1} parent=0 // pred_check_branch
    %10 = sbr.rel (0) target = $region9
  $region8: #{layer_norm.1} parent=0 // pred_region
    _
  $region9: #{layer_norm.1} parent=0 // pred_fallthru
    _
  %v11 = vld [vmem:[%s0] sm:$0xf]
  %v12 = vld [vmem:[%s1] sm:$0x1]
  %v13 = vlaneseq
  %v14 = vshrl.u32 %v13, 7
  %v15 = vadd.s32 %v14, 8
  %v16 = vadd.s32 %v14, 16
  %v17 = vadd.s32 %v14, 24
  %v18 = vadd.s32 %v14, 32
  %v19 = vadd.s32 %v14, 40
  %v20 = vadd.s32 %v14, 48
  %v21 = vadd.s32 %v14, 56
  %v22 = vadd.s32 %v14, 64
  %v23 = vadd.s32 %v14, 72
  %v24 = vadd.s32 %v14, 80
  %v25 = vadd.s32 %v14, 88
  %v26 = vadd.s32 %v14, 96
  %v27 = vadd.s32 %v14, 104
  %v28 = vadd.s32 %v14, 112
  %v29 = vadd.s32 %v14, 120
  %v30 = vlaneseq
  %v31 = vand.u32 %v30, 127
  %v32 = vmul.u32 %v31, 32
  %vm33 = vcmp.ge.s32.totalorder %v14, %v32
  %vm34 = vcmp.ge.s32.totalorder %v15, %v32
  %vm35 = vcmp.ge.s32.totalorder %v16, %v32
  %vm36 = vcmp.ge.s32.totalorder %v17, %v32
  %vm37 = vcmp.ge.s32.totalorder %v18, %v32
  %vm38 = vcmp.ge.s32.totalorder %v19, %v32
  %vm39 = vcmp.ge.s32.totalorder %v20, %v32
  %vm40 = vcmp.ge.s32.totalorder %v21, %v32
  %vm41 = vcmp.ge.s32.totalorder %v22, %v32
  %vm42 = vcmp.ge.s32.totalorder %v23, %v32
  %vm43 = vcmp.ge.s32.totalorder %v24, %v32
  %vm44 = vcmp.ge.s32.totalorder %v25, %v32
  %vm45 = vcmp.ge.s32.totalorder %v26, %v32
  %vm46 = vcmp.ge.s32.totalorder %v27, %v32
  %vm47 = vcmp.ge.s32.totalorder %v28, %v32
  %vm48 = vcmp.ge.s32.totalorder %v29, %v32
  %v49 = vadd.s32 %v31, 1
  %v50 = vmul.u32 %v49, 32
  %vm51 = vcmp.lt.s32.totalorder %v14, %v50
  %vm52 = vcmp.lt.s32.totalorder %v15, %v50
  %vm53 = vcmp.lt.s32.totalorder %v16, %v50
  %vm54 = vcmp.lt.s32.totalorder %v17, %v50
  %vm55 = vcmp.lt.s32.totalorder %v18, %v50
  %vm56 = vcmp.lt.s32.totalorder %v19, %v50
  %vm57 = vcmp.lt.s32.totalorder %v20, %v50
  %vm58 = vcmp.lt.s32.totalorder %v21, %v50
  %vm59 = vcmp.lt.s32.totalorder %v22, %v50
  %vm60 = vcmp.lt.s32.totalorder %v23, %v50
  %vm61 = vcmp.lt.s32.totalorder %v24, %v50
  %vm62 = vcmp.lt.s32.totalorder %v25, %v50
  %vm63 = vcmp.lt.s32.totalorder %v26, %v50
  %vm64 = vcmp.lt.s32.totalorder %v27, %v50
  %vm65 = vcmp.lt.s32.totalorder %v28, %v50
  %vm66 = vcmp.lt.s32.totalorder %v29, %v50
  %vm67 = vmand %vm33, %vm51
  %vm68 = vmand %vm34, %vm52
  %vm69 = vmand %vm35, %vm53
  %vm70 = vmand %vm36, %vm54
  %vm71 = vmand %vm37, %vm55
  %vm72 = vmand %vm38, %vm56
  %vm73 = vmand %vm39, %vm57
  %vm74 = vmand %vm40, %vm58
  %vm75 = vmand %vm41, %vm59
  %vm76 = vmand %vm42, %vm60
  %vm77 = vmand %vm43, %vm61
  %vm78 = vmand %vm44, %vm62
  %vm79 = vmand %vm45, %vm63
  %vm80 = vmand %vm46, %vm64
  %vm81 = vmand %vm47, %vm65
  %vm82 = vmand %vm48, %vm66
  %v83 = vsel %vm67, 1, 0
  %v84 = vsel %vm68, 1, 0
  %v85 = vsel %vm69, 1, 0
  %v86 = vsel %vm70, 1, 0
  %v87 = vsel %vm71, 1, 0
  %v88 = vsel %vm72, 1, 0
  %v89 = vsel %vm73, 1, 0
  %v90 = vsel %vm74, 1, 0
  %v91 = vsel %vm75, 1, 0
  %v92 = vsel %vm76, 1, 0
  %v93 = vsel %vm77, 1, 0
  %v94 = vsel %vm78, 1, 0
  %v95 = vsel %vm79, 1, 0
  %v96 = vsel %vm80, 1, 0
  %v97 = vsel %vm81, 1, 0
  %v98 = vsel %vm82, 1, 0
  %v99 = vcvt.s32.f32 %v83
  %v100 = vcvt.s32.f32 %v84
  %v101 = vcvt.s32.f32 %v85
  %v102 = vcvt.s32.f32 %v86
  %v103 = vcvt.s32.f32 %v87
  %v104 = vcvt.s32.f32 %v88
  %v105 = vcvt.s32.f32 %v89
  %v106 = vcvt.s32.f32 %v90
  %v107 = vcvt.s32.f32 %v91
  %v108 = vcvt.s32.f32 %v92
  %v109 = vcvt.s32.f32 %v93
  %v110 = vcvt.s32.f32 %v94
  %v111 = vcvt.s32.f32 %v95
  %v112 = vcvt.s32.f32 %v96
  %v113 = vcvt.s32.f32 %v97
  %v114 = vcvt.s32.f32 %v98
  %v115 = vmul.u32 %v14, 32
  %vm116 = vcmp.ge.s32.totalorder %v31, %v115
  %v117 = vadd.s32 %v14, 1
  %v118 = vmul.u32 %v117, 32
  %vm119 = vcmp.lt.s32.totalorder %v31, %v118
  %vm120 = vmand %vm116, %vm119
  %v121 = vsel %vm120, 1, 0
  %v122 = vcvt.s32.f32 %v121
  %123 = vmatprep.subr.mxu0 0.0
  %124 = vmatpush1.msra.mxu0 %v99
  %125 = vmatprep.subr.mxu0 0.0
  %126 = vmatpush1.msra.mxu0 %v100
  %127 = vmatprep.subr.mxu0 0.0
  %128 = vmatpush1.msra.mxu0 %v101
  %129 = vmatprep.subr.mxu0 0.0
  %130 = vmatpush1.msra.mxu0 %v102
  %131 = vmatprep.subr.mxu0 0.0
  %132 = vmatpush1.msra.mxu0 %v103
  %133 = vmatprep.subr.mxu0 0.0
  %134 = vmatpush1.msra.mxu0 %v104
  %135 = vmatprep.subr.mxu0 0.0
  %136 = vmatpush1.msra.mxu0 %v105
  %137 = vmatprep.subr.mxu0 0.0
  %138 = vmatpush1.msra.mxu0 %v106
  %139 = vmatprep.subr.mxu0 0.0
  %140 = vmatpush1.msra.mxu0 %v107
  %141 = vmatprep.subr.mxu0 0.0
  %142 = vmatpush1.msra.mxu0 %v108
  %143 = vmatprep.subr.mxu0 0.0
  %144 = vmatpush1.msra.mxu0 %v109
  %145 = vmatprep.subr.mxu0 0.0
  %146 = vmatpush1.msra.mxu0 %v110
  %147 = vmatprep.subr.mxu0 0.0
  %148 = vmatpush1.msra.mxu0 %v111
  %149 = vmatprep.subr.mxu0 0.0
  %150 = vmatpush1.msra.mxu0 %v112
  %151 = vmatprep.subr.mxu0 0.0
  %152 = vmatpush1.msra.mxu0 %v113
  %153 = vmatprep.subr.mxu0 0.0
  %154 = vmatpush1.msra.mxu0 %v114
  %155 = vmatprep.subr.mxu0 0.0
  %156 = vmatpush1.msra.mxu0 0.0
  %157 = vmatprep.subr.mxu0 0.0
  %158 = vmatpush1.msra.mxu0 0.0
  %159 = vmatprep.subr.mxu0 0.0
  %160 = vmatpush1.msra.mxu0 0.0
  %161 = vmatprep.subr.mxu0 0.0
  %162 = vmatpush1.msra.mxu0 0.0
  %163 = vmatprep.subr.mxu0 0.0
  %164 = vmatpush1.msra.mxu0 0.0
  %165 = vmatprep.subr.mxu0 0.0
  %166 = vmatpush1.msra.mxu0 0.0
  %167 = vmatprep.subr.mxu0 0.0
  %168 = vmatpush1.msra.mxu0 0.0
  %169 = vmatprep.subr.mxu0 0.0
  %170 = vmatpush1.msra.mxu0 0.0
  %171 = vmatprep.subr.mxu0 0.0
  %172 = vmatpush1.msra.mxu0 0.0
  %173 = vmatprep.subr.mxu0 0.0
  %174 = vmatpush1.msra.mxu0 0.0
  %175 = vmatprep.subr.mxu0 0.0
  %176 = vmatpush1.msra.mxu0 0.0
  %177 = vmatprep.subr.mxu0 0.0
  %178 = vmatpush1.msra.mxu0 0.0
  %179 = vmatprep.subr.mxu0 0.0
  %180 = vmatpush1.msra.mxu0 0.0
  %181 = vmatprep.subr.mxu0 0.0
  %182 = vmatpush1.msra.mxu0 0.0
  %183 = vmatprep.subr.mxu0 0.0
  %184 = vmatpush1.msra.mxu0 0.0
  %185 = vmatprep.subr.mxu0 0.0
  %186 = vmatpush1.msra.mxu0 0.0
  %187 = vmatprep.mubr.f32.mxu0 0.0
  %188 = vmatmul.mubr.f32.gmra.mrb[0].mxu0 %v11
  %v189 = vpop.f32.mrb[0].mxu0
  %v190 = vadd.f32 0.0, %v189
  %v191 = vpop.f32.mrb[0].mxu0
  %192 = vdwg.mxu0
  %v193 = vmul.f32 %v190, 0.03125
  %vm194 = vcmask 31744
  %v196 = vsel %vm194, %v193, 0
  %vm198 = vcmask 1043456
  %v200 = vsel %vm198, %v122, 0
  %202 = vmatprep.subr.mxu0 0.0
  %203 = vmatpush1.msra.mxu0 %v200
  %204 = vmatprep.subr.mxu0 0.0
  %205 = vmatpush1.msra.mxu0 0.0
  %206 = vmatprep.subr.mxu0 0.0
  %207 = vmatpush1.msra.mxu0 0.0
  %208 = vmatprep.subr.mxu0 0.0
  %209 = vmatpush1.msra.mxu0 0.0
  %210 = vmatprep.subr.mxu0 0.0
  %211 = vmatpush1.msra.mxu0 0.0
  %212 = vmatprep.subr.mxu0 0.0
  %213 = vmatpush1.msra.mxu0 0.0
  %214 = vmatprep.subr.mxu0 0.0
  %215 = vmatpush1.msra.mxu0 0.0
  %216 = vmatprep.subr.mxu0 0.0
  %217 = vmatpush1.msra.mxu0 0.0
  %218 = vmatprep.subr.mxu0 0.0
  %219 = vmatpush1.msra.mxu0 0.0
  %220 = vmatprep.subr.mxu0 0.0
  %221 = vmatpush1.msra.mxu0 0.0
  %222 = vmatprep.subr.mxu0 0.0
  %223 = vmatpush1.msra.mxu0 0.0
  %224 = vmatprep.subr.mxu0 0.0
  %225 = vmatpush1.msra.mxu0 0.0
  %226 = vmatprep.subr.mxu0 0.0
  %227 = vmatpush1.msra.mxu0 0.0
  %228 = vmatprep.subr.mxu0 0.0
  %229 = vmatpush1.msra.mxu0 0.0
  %230 = vmatprep.subr.mxu0 0.0
  %231 = vmatpush1.msra.mxu0 0.0
  %232 = vmatprep.subr.mxu0 0.0
  %233 = vmatpush1.msra.mxu0 0.0
  %234 = vmatprep.subr.mxu0 0.0
  %235 = vmatpush1.msra.mxu0 0.0
  %236 = vmatprep.subr.mxu0 0.0
  %237 = vmatpush1.msra.mxu0 0.0
  %238 = vmatprep.subr.mxu0 0.0
  %239 = vmatpush1.msra.mxu0 0.0
  %240 = vmatprep.subr.mxu0 0.0
  %241 = vmatpush1.msra.mxu0 0.0
  %242 = vmatprep.subr.mxu0 0.0
  %243 = vmatpush1.msra.mxu0 0.0
  %244 = vmatprep.subr.mxu0 0.0
  %245 = vmatpush1.msra.mxu0 0.0
  %246 = vmatprep.subr.mxu0 0.0
  %247 = vmatpush1.msra.mxu0 0.0
  %248 = vmatprep.subr.mxu0 0.0
  %249 = vmatpush1.msra.mxu0 0.0
  %250 = vmatprep.subr.mxu0 0.0
  %251 = vmatpush1.msra.mxu0 0.0
  %252 = vmatprep.subr.mxu0 0.0
  %253 = vmatpush1.msra.mxu0 0.0
  %254 = vmatprep.subr.mxu0 0.0
  %255 = vmatpush1.msra.mxu0 0.0
  %256 = vmatprep.subr.mxu0 0.0
  %257 = vmatpush1.msra.mxu0 0.0
  %258 = vmatprep.subr.mxu0 0.0
  %259 = vmatpush1.msra.mxu0 0.0
  %260 = vmatprep.subr.mxu0 0.0
  %261 = vmatpush1.msra.mxu0 0.0
  %262 = vmatprep.subr.mxu0 0.0
  %263 = vmatpush1.msra.mxu0 0.0
  %264 = vmatprep.subr.mxu0 0.0
  %265 = vmatpush1.msra.mxu0 0.0
  %266 = vmatprep.mubr.f32.mxu0 0.0
  %267 = vmatmul.mubr.f32.gmra.mrb[0].mxu0 %v196
  %v268 = vpop.f32.mrb[0].mxu0
  %v269 = vadd.f32 0.0, %v268
  %v270 = vpop.f32.mrb[0].mxu0
  %271 = vdwg.mxu0
  %v272 = vsub.f32 %v11, %v269
  %v273 = vmul.f32 %v272, %v272
  %274 = vmatprep.subr.mxu0 0.0
  %275 = vmatpush1.msra.mxu0 %v99
  %276 = vmatprep.subr.mxu0 0.0
  %277 = vmatpush1.msra.mxu0 %v100
  %278 = vmatprep.subr.mxu0 0.0
  %279 = vmatpush1.msra.mxu0 %v101
  %280 = vmatprep.subr.mxu0 0.0
  %281 = vmatpush1.msra.mxu0 %v102
  %282 = vmatprep.subr.mxu0 0.0
  %283 = vmatpush1.msra.mxu0 %v103
  %284 = vmatprep.subr.mxu0 0.0
  %285 = vmatpush1.msra.mxu0 %v104
  %286 = vmatprep.subr.mxu0 0.0
  %287 = vmatpush1.msra.mxu0 %v105
  %288 = vmatprep.subr.mxu0 0.0
  %289 = vmatpush1.msra.mxu0 %v106
  %290 = vmatprep.subr.mxu0 0.0
  %291 = vmatpush1.msra.mxu0 %v107
  %292 = vmatprep.subr.mxu0 0.0
  %293 = vmatpush1.msra.mxu0 %v108
  %294 = vmatprep.subr.mxu0 0.0
  %295 = vmatpush1.msra.mxu0 %v109
  %296 = vmatprep.subr.mxu0 0.0
  %297 = vmatpush1.msra.mxu0 %v110
  %298 = vmatprep.subr.mxu0 0.0
  %299 = vmatpush1.msra.mxu0 %v111
  %300 = vmatprep.subr.mxu0 0.0
  %301 = vmatpush1.msra.mxu0 %v112
  %302 = vmatprep.subr.mxu0 0.0
  %303 = vmatpush1.msra.mxu0 %v113
  %304 = vmatprep.subr.mxu0 0.0
  %305 = vmatpush1.msra.mxu0 %v114
  %306 = vmatprep.subr.mxu0 0.0
  %307 = vmatpush1.msra.mxu0 0.0
  %308 = vmatprep.subr.mxu0 0.0
  %309 = vmatpush1.msra.mxu0 0.0
  %310 = vmatprep.subr.mxu0 0.0
  %311 = vmatpush1.msra.mxu0 0.0
  %312 = vmatprep.subr.mxu0 0.0
  %313 = vmatpush1.msra.mxu0 0.0
  %314 = vmatprep.subr.mxu0 0.0
  %315 = vmatpush1.msra.mxu0 0.0
  %316 = vmatprep.subr.mxu0 0.0
  %317 = vmatpush1.msra.mxu0 0.0
  %318 = vmatprep.subr.mxu0 0.0
  %319 = vmatpush1.msra.mxu0 0.0
  %320 = vmatprep.subr.mxu0 0.0
  %321 = vmatpush1.msra.mxu0 0.0
  %322 = vmatprep.subr.mxu0 0.0
  %323 = vmatpush1.msra.mxu0 0.0
  %324 = vmatprep.subr.mxu0 0.0
  %325 = vmatpush1.msra.mxu0 0.0
  %326 = vmatprep.subr.mxu0 0.0
  %327 = vmatpush1.msra.mxu0 0.0
  %328 = vmatprep.subr.mxu0 0.0
  %329 = vmatpush1.msra.mxu0 0.0
  %330 = vmatprep.subr.mxu0 0.0
  %331 = vmatpush1.msra.mxu0 0.0
  %332 = vmatprep.subr.mxu0 0.0
  %333 = vmatpush1.msra.mxu0 0.0
  %334 = vmatprep.subr.mxu0 0.0
  %335 = vmatpush1.msra.mxu0 0.0
  %336 = vmatprep.subr.mxu0 0.0
  %337 = vmatpush1.msra.mxu0 0.0
  %338 = vmatprep.mubr.f32.mxu0 0.0
  %339 = vmatmul.mubr.f32.gmra.mrb[0].mxu0 %v273
  %v340 = vpop.f32.mrb[0].mxu0
  %v341 = vadd.f32 0.0, %v340
  %v342 = vpop.f32.mrb[0].mxu0
  %343 = vdwg.mxu0
  %v344 = vmul.f32 %v341, 0.03125
  %v345 = vadd.f32 %v344, 1e-05
  %v346 = vrsqrt.pop %v345
  %v348 = vsel %vm194, %v346, 0
  %350 = vmatprep.subr.mxu0 0.0
  %351 = vmatpush1.msra.mxu0 %v200
  %352 = vmatprep.subr.mxu0 0.0
  %353 = vmatpush1.msra.mxu0 0.0
  %354 = vmatprep.subr.mxu0 0.0
  %355 = vmatpush1.msra.mxu0 0.0
  %356 = vmatprep.subr.mxu0 0.0
  %357 = vmatpush1.msra.mxu0 0.0
  %358 = vmatprep.subr.mxu0 0.0
  %359 = vmatpush1.msra.mxu0 0.0
  %360 = vmatprep.subr.mxu0 0.0
  %361 = vmatpush1.msra.mxu0 0.0
  %362 = vmatprep.subr.mxu0 0.0
  %363 = vmatpush1.msra.mxu0 0.0
  %364 = vmatprep.subr.mxu0 0.0
  %365 = vmatpush1.msra.mxu0 0.0
  %366 = vmatprep.subr.mxu0 0.0
  %367 = vmatpush1.msra.mxu0 0.0
  %368 = vmatprep.subr.mxu0 0.0
  %369 = vmatpush1.msra.mxu0 0.0
  %370 = vmatprep.subr.mxu0 0.0
  %371 = vmatpush1.msra.mxu0 0.0
  %372 = vmatprep.subr.mxu0 0.0
  %373 = vmatpush1.msra.mxu0 0.0
  %374 = vmatprep.subr.mxu0 0.0
  %375 = vmatpush1.msra.mxu0 0.0
  %376 = vmatprep.subr.mxu0 0.0
  %377 = vmatpush1.msra.mxu0 0.0
  %378 = vmatprep.subr.mxu0 0.0
  %379 = vmatpush1.msra.mxu0 0.0
  %380 = vmatprep.subr.mxu0 0.0
  %381 = vmatpush1.msra.mxu0 0.0
  %382 = vmatprep.subr.mxu0 0.0
  %383 = vmatpush1.msra.mxu0 0.0
  %384 = vmatprep.subr.mxu0 0.0
  %385 = vmatpush1.msra.mxu0 0.0
  %386 = vmatprep.subr.mxu0 0.0
  %387 = vmatpush1.msra.mxu0 0.0
  %388 = vmatprep.subr.mxu0 0.0
  %389 = vmatpush1.msra.mxu0 0.0
  %390 = vmatprep.subr.mxu0 0.0
  %391 = vmatpush1.msra.mxu0 0.0
  %392 = vmatprep.subr.mxu0 0.0
  %393 = vmatpush1.msra.mxu0 0.0
  %394 = vmatprep.subr.mxu0 0.0
  %395 = vmatpush1.msra.mxu0 0.0
  %396 = vmatprep.subr.mxu0 0.0
  %397 = vmatpush1.msra.mxu0 0.0
  %398 = vmatprep.subr.mxu0 0.0
  %399 = vmatpush1.msra.mxu0 0.0
  %400 = vmatprep.subr.mxu0 0.0
  %401 = vmatpush1.msra.mxu0 0.0
  %402 = vmatprep.subr.mxu0 0.0
  %403 = vmatpush1.msra.mxu0 0.0
  %404 = vmatprep.subr.mxu0 0.0
  %405 = vmatpush1.msra.mxu0 0.0
  %406 = vmatprep.subr.mxu0 0.0
  %407 = vmatpush1.msra.mxu0 0.0
  %408 = vmatprep.subr.mxu0 0.0
  %409 = vmatpush1.msra.mxu0 0.0
  %410 = vmatprep.subr.mxu0 0.0
  %411 = vmatpush1.msra.mxu0 0.0
  %412 = vmatprep.subr.mxu0 0.0
  %413 = vmatpush1.msra.mxu0 0.0
  %414 = vmatprep.mubr.f32.mxu0 0.0
  %415 = vmatmul.mubr.f32.gmra.mrb[0].mxu0 %v348
  %v416 = vpop.f32.mrb[0].mxu0
  %v417 = vadd.f32 0.0, %v416
  %v418 = vpop.f32.mrb[0].mxu0
  %419 = vdwg.mxu0
  %v420 = vmul.f32 %v272, %v417
  %v422 = vlaneseq
  %v423 = vshrl.u32 %v422, 7
  %v424 = vsub.s32 0, %v423
  %v425 = vrot.slane %v12, %v424
  %v427 = vmul.f32 %v420, %v425
  %428 = vst [vmem:[%s2] sm:$0xf] %v427
  // Predicated region
  $region10: #{layer_norm.1} parent=0 // pred_check
    _
  $region11: #{layer_norm.1} parent=0 // pred_check_branch
    %430 = sbr.rel (0) target = $region13
  $region12: #{layer_norm.1} parent=0 // pred_region
    _
  $region13: #{layer_norm.1} parent=0 // pred_fallthru
    _
  // Predicated region
  $region14: #{layer_norm.1} parent=0 // pred_check
    _
  $region15: #{layer_norm.1} parent=0 // pred_check_branch
    %432 = sbr.rel (0) target = $region17
  $region16: #{layer_norm.1} parent=0 // pred_region
    _
  $region17: #{layer_norm.1} parent=0 // pred_fallthru
    _

</llo_original>
